<compile_context>
chip_gen: v5e
topology: v5e:2x2
jax: 0.10.0
libtpu: 0.0.40
codegen_flags: <defaults>
</compile_context>

<pallas_src>
import functools
import math

import jax
import jax.numpy as jnp
from jax.experimental import pallas as pl
from jax.experimental.pallas import tpu as pltpu


def _attention_share_kernel(meta_ref, hid_ref, wk_ref, wv_ref, wq_ref, wo_ref,
                            gamma_ref, beta_ref, out_ref, *,
                            batch_block, seq_len, attention_size):
    BB, S, A = batch_block, seq_len, attention_size
    scale = 1.0 / math.sqrt(A)

    # Cast activations to bf16 in-kernel (HBM carries them once, as f32).
    meta = meta_ref[...].astype(jnp.bfloat16)                    # (BB*S, Dv)
    hid = hid_ref[...].astype(jnp.bfloat16)                      # (BB, Dk)

    # K / V / Q projections: bf16 MXU dots, f32 accumulation.
    k = jnp.dot(meta, wk_ref[...],
                preferred_element_type=jnp.float32).reshape(BB, S, A)
    v = jnp.dot(meta, wv_ref[...],
                preferred_element_type=jnp.float32).reshape(BB, S, A)
    q = jnp.dot(hid, wq_ref[...],
                preferred_element_type=jnp.float32)              # (BB, A)

    # Attention scores: VPU broadcast-multiply + lane reduce over A
    # (avoids an N=1 MXU matmul).
    logits = jnp.sum(k * q[:, None, :], axis=-1) * scale         # (BB, S)

    # Softmax over the sequence axis (torch dim=1).
    m = jnp.max(logits, axis=-1, keepdims=True)
    e = jnp.exp(logits - m)
    denom = jnp.sum(e, axis=-1, keepdims=True)
    w = e * pl.reciprocal(denom, approx=True)                    # EUP slot

    # Weighted sum over S: VPU multiply + sublane reduce.
    mid = jnp.sum(v * w[:, :, None], axis=1)                     # (BB, A) f32

    # output_layer: Linear(A->A, no bias) -> Tanh -> LayerNorm(A) -> Dropout(id).
    out = jnp.dot(mid.astype(jnp.bfloat16), wo_ref[...],
                  preferred_element_type=jnp.float32)
    out = jnp.tanh(out)
    mu = jnp.mean(out, axis=-1, keepdims=True)
    var = jnp.mean((out - mu) ** 2, axis=-1, keepdims=True)
    out = (out - mu) * jax.lax.rsqrt(var + 1e-5)
    out = out * gamma_ref[...] + beta_ref[...]

    # Single packed store: [attention | softmax weights] -> (BB, A + S).
    out_ref[...] = jnp.concatenate([out, w], axis=-1)


def _vmem_capacity_bytes():
    """Physical per-core VMEM; conservative (v7x-sized) fallback if unknown."""
    try:
        return int(pltpu.get_tpu_info().vmem_capacity_bytes)
    except Exception:
        return 64 * 1024 * 1024


def _derive_batch_block(S, Dv, Dk, A, vmem_budget):
    """Largest batch tile whose per-step working set fits the VMEM budget."""
    per_row = (
        2 * S * Dv * 4        # meta tile (f32, double-buffered)
        + S * Dv * 2          # in-kernel bf16 copy of the meta tile
        + 2 * Dk * 4          # hidden tile (f32, double-buffered)
        + 4 * S * A * 4       # K / V f32 intermediates (+ broadcast slack)
        + 2 * (A + S) * 4     # packed output slab (f32, double-buffered)
    )
    fixed = 2 * ((2 * Dv + Dk + A) * A * 2 + 2 * A * 4)  # bf16 weights + LN params
    bb = (vmem_budget - fixed) // per_row
    bb = min(bb, max(1, 2048 // S))     # keep the matmul M dim (BB*S) <= ~2048
    return max(1, int(bb))


def attention_share_forward(meta_state, hidden_previous, params):
    """AttentionShare forward via a batch-tiled Pallas TPU kernel."""
    B, S, Dv = meta_state.shape
    _, Dk = hidden_previous.shape
    A = params["wq"].shape[1]

    vmem_cap = _vmem_capacity_bytes()
    bb_max = _derive_batch_block(S, Dv, Dk, A, vmem_budget=vmem_cap // 2)

    if B <= bb_max:
        # Single fat grid step (block shapes == full array dims, no padding).
        BB, G = B, 1
    else:
        # Multi-step grid: keep BB sublane-aligned so tiled blocks are legal;
        # with G >= 2 the "parallel" batch axis shards across v7x's two TCs.
        align = 16 if bb_max >= 16 else 8
        BB = max(align, (bb_max // align) * align)
        G = pl.cdiv(B, BB)
    B_pad = G * BB
    if B_pad != B:
        pad = B_pad - B
        meta_state = jnp.pad(meta_state, ((0, pad), (0, 0), (0, 0)))
        hidden_previous = jnp.pad(hidden_previous, ((0, pad), (0, 0)))

    # Activations stay f32 into the kernel (cast to bf16 in-kernel); only the
    # small projection weights are pre-cast to bf16.
    meta_flat = meta_state.reshape(B_pad * S, Dv)
    wk = params["wk"].astype(jnp.bfloat16)
    wv = params["wv"].astype(jnp.bfloat16)
    wq = params["wq"].astype(jnp.bfloat16)
    wo = params["wo"].astype(jnp.bfloat16)

    P = A + S
    kernel = functools.partial(_attention_share_kernel,
                               batch_block=BB, seq_len=S, attention_size=A)

    packed = pl.pallas_call(
        kernel,
        out_shape=jax.ShapeDtypeStruct((B_pad, P), jnp.float32),
        grid_spec=pltpu.PrefetchScalarGridSpec(
            num_scalar_prefetch=0,
            grid=(G,),
            in_specs=[
                pl.BlockSpec((BB * S, Dv), lambda g: (g, 0)),   # meta (flat, f32)
                pl.BlockSpec((BB, Dk), lambda g: (g, 0)),       # hidden_prev (2D)
                pl.BlockSpec((Dv, A), lambda g: (0, 0)),        # W_K (bf16)
                pl.BlockSpec((Dv, A), lambda g: (0, 0)),        # W_V (bf16)
                pl.BlockSpec((Dk, A), lambda g: (0, 0)),        # W_Q (bf16)
                pl.BlockSpec((A, A), lambda g: (0, 0)),         # W_out (bf16)
                pl.BlockSpec((1, A), lambda g: (0, 0)),         # LN gamma
                pl.BlockSpec((1, A), lambda g: (0, 0)),         # LN beta
            ],
            out_specs=pl.BlockSpec((BB, P), lambda g: (g, 0)),  # [attn | weights]
        ),
        compiler_params=pltpu.CompilerParams(
            dimension_semantics=("parallel",),
            vmem_limit_bytes=int(vmem_cap * 3 // 4),
        ),
    )(meta_flat, hidden_previous, wk, wv, wq, wo,
      params["gamma"], params["beta"])

    attn = packed[:B, :A]                       # (B, A)
    weight = packed[:B, A:][:, :, None]         # (B, S, 1) like the module
    return attn, weight


def _ref_forward(meta, hid, p):
    """Pure-JAX reference mirroring the PyTorch module (eval mode).

    Uses the same bf16 rounding of the MXU inputs (activations, K/Q/V/out
    weights, and `mid`) as the kernel, with full-f32 matmuls, so the
    comparison is apples-to-apples.
    """
    bf = lambda x: x.astype(jnp.bfloat16).astype(jnp.float32)
    hp = jax.lax.Precision.HIGHEST
    A = p["wq"].shape[1]
    K = jnp.matmul(bf(meta), bf(p["wk"]), precision=hp)             # (B, S, A)
    Q = jnp.matmul(bf(hid), bf(p["wq"]), precision=hp)[:, :, None]  # (B, A, 1)
    V = jnp.swapaxes(jnp.matmul(bf(meta), bf(p["wv"]), precision=hp), -1, -2)
    logits = jnp.matmul(K, Q, precision=hp) / math.sqrt(A)          # (B, S, 1)
    w = jax.nn.softmax(logits, axis=1)
    mid = jnp.matmul(V, w, precision=hp)[:, :, 0]                   # (B, A)
    out = jnp.tanh(jnp.matmul(bf(mid), bf(p["wo"]), precision=hp))
    mu = out.mean(-1, keepdims=True)
    var = ((out - mu) ** 2).mean(-1, keepdims=True)
    out = (out - mu) * jax.lax.rsqrt(var + 1e-5)
    out = out * p["gamma"][0] + p["beta"][0]
    return out, w


def _init_params(key, input_value_size, input_key_size, output_size):
    """Deterministic init mirroring the shapes from __init__ (no checkpoint)."""
    ks = jax.random.split(key, 4)

    def linear_w(k, fan_in, fan_out):
        bound = 1.0 / math.sqrt(fan_in)
        # Stored as (in, out) so forward is x @ W  (== PyTorch x @ W.T layout)
        return jax.random.uniform(k, (fan_in, fan_out), jnp.float32, -bound, bound)

    return {
        "wk": linear_w(ks[0], input_value_size, output_size),
        "wq": linear_w(ks[1], input_key_size, output_size),
        "wv": linear_w(ks[2], input_value_size, output_size),
        "wo": linear_w(ks[3], output_size, output_size),
        "gamma": jnp.ones((1, output_size), jnp.float32),
        "beta": jnp.zeros((1, output_size), jnp.float32),
    }


if __name__ == "__main__":
    B, S = 2, 8
    input_value_size = 32   # Dv
    input_key_size = 16     # Dk
    output_size = 32        # A (attention_size)

    root = jax.random.PRNGKey(0)
    k_meta, k_hid, k_par = jax.random.split(root, 3)

    meta_state = jax.random.normal(k_meta, (B, S, input_value_size), jnp.float32)
    hidden_previous = jax.random.normal(k_hid, (B, input_key_size), jnp.float32)
    params = _init_params(k_par, input_value_size, input_key_size, output_size)

    attn, weight = attention_share_forward(meta_state, hidden_previous, params)
    jax.block_until_ready((attn, weight))

    attn_ref, weight_ref = _ref_forward(meta_state, hidden_previous, params)
    assert attn.shape == (B, output_size)
    assert weight.shape == (B, S, 1)
    # Tolerances cover bf16 MXU inputs + the EUP approximate reciprocal in the
    # softmax (all accumulation / epilogue math is f32).
    assert jnp.allclose(attn, attn_ref, atol=5e-3, rtol=5e-3)
    assert jnp.allclose(weight, weight_ref, atol=2e-3, rtol=2e-3)

    print("KERNEL_OK")
</pallas_src>

<mosaic_0001>
module attributes {stable_mosaic.version = 11 : i64} {
  func.func @_attention_share_kernel(%arg0: i32, %arg1: memref<16x32xf32, #tpu.memory_space<vmem>>, %arg2: memref<2x16xf32, #tpu.memory_space<vmem>>, %arg3: memref<32x32xbf16, #tpu.memory_space<vmem>>, %arg4: memref<32x32xbf16, #tpu.memory_space<vmem>>, %arg5: memref<16x32xbf16, #tpu.memory_space<vmem>>, %arg6: memref<32x32xbf16, #tpu.memory_space<vmem>>, %arg7: memref<1x32xf32, #tpu.memory_space<vmem>>, %arg8: memref<1x32xf32, #tpu.memory_space<vmem>>, %arg9: memref<2x40xf32, #tpu.memory_space<vmem>>) attributes {dimension_semantics = [#tpu.dimension_semantics<parallel>], iteration_bounds = array<i64: 1>, scalar_prefetch = 0 : i64, scratch_operands = 0 : i64, tpu.core_type = #tpu.core_type<tc>, window_params = [{transform_indices = @transform_0, window_bounds = array<i64: 16, 32>}, {transform_indices = @transform_1, window_bounds = array<i64: 2, 16>}, {pipeline_mode = #tpu.pipeline_mode<synchronous>, transform_indices = @transform_2, window_bounds = array<i64: 32, 32>}, {pipeline_mode = #tpu.pipeline_mode<synchronous>, transform_indices = @transform_3, window_bounds = array<i64: 32, 32>}, {pipeline_mode = #tpu.pipeline_mode<synchronous>, transform_indices = @transform_4, window_bounds = array<i64: 16, 32>}, {pipeline_mode = #tpu.pipeline_mode<synchronous>, transform_indices = @transform_5, window_bounds = array<i64: 32, 32>}, {pipeline_mode = #tpu.pipeline_mode<synchronous>, transform_indices = @transform_6, window_bounds = array<i64: 1, 32>}, {pipeline_mode = #tpu.pipeline_mode<synchronous>, transform_indices = @transform_7, window_bounds = array<i64: 1, 32>}, {transform_indices = @transform_8, window_bounds = array<i64: 2, 40>}]} {
    %c0 = arith.constant 0 : index
    %c0_0 = arith.constant 0 : index
    %0 = vector.load %arg1[%c0, %c0_0] : memref<16x32xf32, #tpu.memory_space<vmem>>, vector<16x32xf32>
    %1 = arith.truncf %0 : vector<16x32xf32> to vector<16x32xbf16>
    %c0_1 = arith.constant 0 : index
    %c0_2 = arith.constant 0 : index
    %2 = vector.load %arg2[%c0_1, %c0_2] : memref<2x16xf32, #tpu.memory_space<vmem>>, vector<2x16xf32>
    %3 = arith.truncf %2 : vector<2x16xf32> to vector<2x16xbf16>
    %c0_3 = arith.constant 0 : index
    %c0_4 = arith.constant 0 : index
    %4 = vector.load %arg3[%c0_3, %c0_4] : memref<32x32xbf16, #tpu.memory_space<vmem>>, vector<32x32xbf16>
    %cst = arith.constant dense<0.000000e+00> : vector<16x32xf32>
    %5 = tpu.matmul %1, %4, %cst {dimension_numbers = #tpu.dot_dimension_numbers<[1], [0], [0], [1], [0, 0, 1, 1], [], []>} : vector<16x32xbf16>, vector<32x32xbf16>, vector<16x32xf32> -> vector<16x32xf32>
    %6 = vector.shape_cast %5 : vector<16x32xf32> to vector<2x8x32xf32>
    %c0_5 = arith.constant 0 : index
    %c0_6 = arith.constant 0 : index
    %7 = vector.load %arg4[%c0_5, %c0_6] : memref<32x32xbf16, #tpu.memory_space<vmem>>, vector<32x32xbf16>
    %cst_7 = arith.constant dense<0.000000e+00> : vector<16x32xf32>
    %8 = tpu.matmul %1, %7, %cst_7 {dimension_numbers = #tpu.dot_dimension_numbers<[1], [0], [0], [1], [0, 0, 1, 1], [], []>} : vector<16x32xbf16>, vector<32x32xbf16>, vector<16x32xf32> -> vector<16x32xf32>
    %9 = vector.shape_cast %8 : vector<16x32xf32> to vector<2x8x32xf32>
    %c0_8 = arith.constant 0 : index
    %c0_9 = arith.constant 0 : index
    %10 = vector.load %arg5[%c0_8, %c0_9] : memref<16x32xbf16, #tpu.memory_space<vmem>>, vector<16x32xbf16>
    %cst_10 = arith.constant dense<0.000000e+00> : vector<2x32xf32>
    %11 = tpu.matmul %3, %10, %cst_10 {dimension_numbers = #tpu.dot_dimension_numbers<[1], [0], [0], [1], [0, 0, 1, 1], [], []>} : vector<2x16xbf16>, vector<16x32xbf16>, vector<2x32xf32> -> vector<2x32xf32>
    %12 = vector.shape_cast %11 : vector<2x32xf32> to vector<2x1x32xf32>
    %13 = vector.broadcast %12 : vector<2x1x32xf32> to vector<2x8x32xf32>
    %14 = arith.mulf %6, %13 : vector<2x8x32xf32>
    %cst_11 = arith.constant dense<0.000000e+00> : vector<2x8xf32>
    %15 = vector.multi_reduction <add>, %14, %cst_11 [2] : vector<2x8x32xf32> to vector<2x8xf32>
    %cst_12 = arith.constant 0.176776692 : f32
    %16 = vector.broadcast %cst_12 : f32 to vector<2x8xf32>
    %17 = arith.mulf %15, %16 : vector<2x8xf32>
    %cst_13 = arith.constant dense<0xFF800000> : vector<2xf32>
    %18 = vector.multi_reduction <maximumf>, %17, %cst_13 [1] : vector<2x8xf32> to vector<2xf32>
    %19 = vector.shape_cast %18 : vector<2xf32> to vector<2x1xf32>
    %20 = vector.broadcast %19 : vector<2x1xf32> to vector<2x8xf32>
    %21 = arith.subf %17, %20 : vector<2x8xf32>
    %22 = math.exp %21 : vector<2x8xf32>
    %cst_14 = arith.constant dense<0.000000e+00> : vector<2xf32>
    %23 = vector.multi_reduction <add>, %22, %cst_14 [1] : vector<2x8xf32> to vector<2xf32>
    %24 = vector.shape_cast %23 : vector<2xf32> to vector<2x1xf32>
    %25 = tpu.reciprocal %24 {approx = true} : vector<2x1xf32> -> vector<2x1xf32>
    %26 = vector.broadcast %25 : vector<2x1xf32> to vector<2x8xf32>
    %27 = arith.mulf %22, %26 : vector<2x8xf32>
    %28 = vector.shape_cast %27 : vector<2x8xf32> to vector<2x8x1xf32>
    %29 = vector.broadcast %28 : vector<2x8x1xf32> to vector<2x8x32xf32>
    %30 = arith.mulf %9, %29 : vector<2x8x32xf32>
    %cst_15 = arith.constant dense<0.000000e+00> : vector<2x32xf32>
    %31 = vector.multi_reduction <add>, %30, %cst_15 [1] : vector<2x8x32xf32> to vector<2x32xf32>
    %32 = arith.truncf %31 : vector<2x32xf32> to vector<2x32xbf16>
    %c0_16 = arith.constant 0 : index
    %c0_17 = arith.constant 0 : index
    %33 = vector.load %arg6[%c0_16, %c0_17] : memref<32x32xbf16, #tpu.memory_space<vmem>>, vector<32x32xbf16>
    %cst_18 = arith.constant dense<0.000000e+00> : vector<2x32xf32>
    %34 = tpu.matmul %32, %33, %cst_18 {dimension_numbers = #tpu.dot_dimension_numbers<[1], [0], [0], [1], [0, 0, 1, 1], [], []>} : vector<2x32xbf16>, vector<32x32xbf16>, vector<2x32xf32> -> vector<2x32xf32>
    %35 = math.tanh %34 : vector<2x32xf32>
    %cst_19 = arith.constant dense<0.000000e+00> : vector<2xf32>
    %36 = vector.multi_reduction <add>, %35, %cst_19 [1] : vector<2x32xf32> to vector<2xf32>
    %37 = vector.shape_cast %36 : vector<2xf32> to vector<2x1xf32>
    %cst_20 = arith.constant 3.200000e+01 : f32
    %38 = vector.broadcast %cst_20 : f32 to vector<2x1xf32>
    %39 = arith.divf %37, %38 : vector<2x1xf32>
    %40 = vector.broadcast %39 : vector<2x1xf32> to vector<2x32xf32>
    %41 = arith.subf %35, %40 : vector<2x32xf32>
    %42 = arith.mulf %41, %41 : vector<2x32xf32>
    %cst_21 = arith.constant dense<0.000000e+00> : vector<2xf32>
    %43 = vector.multi_reduction <add>, %42, %cst_21 [1] : vector<2x32xf32> to vector<2xf32>
    %44 = vector.shape_cast %43 : vector<2xf32> to vector<2x1xf32>
    %cst_22 = arith.constant 3.200000e+01 : f32
    %45 = vector.broadcast %cst_22 : f32 to vector<2x1xf32>
    %46 = arith.divf %44, %45 : vector<2x1xf32>
    %47 = vector.broadcast %39 : vector<2x1xf32> to vector<2x32xf32>
    %48 = arith.subf %35, %47 : vector<2x32xf32>
    %cst_23 = arith.constant 9.99999974E-6 : f32
    %49 = vector.broadcast %cst_23 : f32 to vector<2x1xf32>
    %50 = arith.addf %46, %49 : vector<2x1xf32>
    %51 = math.rsqrt %50 : vector<2x1xf32>
    %52 = vector.broadcast %51 : vector<2x1xf32> to vector<2x32xf32>
    %53 = arith.mulf %48, %52 : vector<2x32xf32>
    %c0_24 = arith.constant 0 : index
    %c0_25 = arith.constant 0 : index
    %54 = vector.load %arg7[%c0_24, %c0_25] : memref<1x32xf32, #tpu.memory_space<vmem>>, vector<1x32xf32>
    %55 = vector.broadcast %54 : vector<1x32xf32> to vector<2x32xf32>
    %56 = arith.mulf %53, %55 : vector<2x32xf32>
    %c0_26 = arith.constant 0 : index
    %c0_27 = arith.constant 0 : index
    %57 = vector.load %arg8[%c0_26, %c0_27] : memref<1x32xf32, #tpu.memory_space<vmem>>, vector<1x32xf32>
    %58 = vector.broadcast %57 : vector<1x32xf32> to vector<2x32xf32>
    %59 = arith.addf %56, %58 : vector<2x32xf32>
    %60 = tpu.concatenate %59, %27 in 1 : vector<2x32xf32>, vector<2x8xf32> -> vector<2x40xf32>
    %c0_28 = arith.constant 0 : index
    %c0_29 = arith.constant 0 : index
    %61 = vector.load %arg9[%c0_28, %c0_29] : memref<2x40xf32, #tpu.memory_space<vmem>>, vector<2x40xf32>
    tpu.vector_store %arg9[%c0_28, %c0_29], %60 {strides = array<i32>} : memref<2x40xf32, #tpu.memory_space<vmem>>, vector<2x40xf32>,
    return
  }
  func.func @transform_0(%arg0: i32) -> (i32, i32) {
    %c0_i32 = arith.constant 0 : i32
    %c0_i32_0 = arith.constant 0 : i32
    return %arg0, %c0_i32 : i32, i32
  }
  func.func @transform_1(%arg0: i32) -> (i32, i32) {
    %c0_i32 = arith.constant 0 : i32
    %c0_i32_0 = arith.constant 0 : i32
    return %arg0, %c0_i32 : i32, i32
  }
  func.func @transform_2(%arg0: i32) -> (i32, i32) {
    %c0_i32 = arith.constant 0 : i32
    %c0_i32_0 = arith.constant 0 : i32
    %c0_i32_1 = arith.constant 0 : i32
    return %c0_i32, %c0_i32_0 : i32, i32
  }
  func.func @transform_3(%arg0: i32) -> (i32, i32) {
    %c0_i32 = arith.constant 0 : i32
    %c0_i32_0 = arith.constant 0 : i32
    %c0_i32_1 = arith.constant 0 : i32
    return %c0_i32, %c0_i32_0 : i32, i32
  }
  func.func @transform_4(%arg0: i32) -> (i32, i32) {
    %c0_i32 = arith.constant 0 : i32
    %c0_i32_0 = arith.constant 0 : i32
    %c0_i32_1 = arith.constant 0 : i32
    return %c0_i32, %c0_i32_0 : i32, i32
  }
  func.func @transform_5(%arg0: i32) -> (i32, i32) {
    %c0_i32 = arith.constant 0 : i32
    %c0_i32_0 = arith.constant 0 : i32
    %c0_i32_1 = arith.constant 0 : i32
    return %c0_i32, %c0_i32_0 : i32, i32
  }
  func.func @transform_6(%arg0: i32) -> (i32, i32) {
    %c0_i32 = arith.constant 0 : i32
    %c0_i32_0 = arith.constant 0 : i32
    %c0_i32_1 = arith.constant 0 : i32
    return %c0_i32, %c0_i32_0 : i32, i32
  }
  func.func @transform_7(%arg0: i32) -> (i32, i32) {
    %c0_i32 = arith.constant 0 : i32
    %c0_i32_0 = arith.constant 0 : i32
    %c0_i32_1 = arith.constant 0 : i32
    return %c0_i32, %c0_i32_0 : i32, i32
  }
  func.func @transform_8(%arg0: i32) -> (i32, i32) {
    %c0_i32 = arith.constant 0 : i32
    %c0_i32_0 = arith.constant 0 : i32
    return %arg0, %c0_i32 : i32, i32
  }
}

</mosaic_0001>

<llo_original>
// kernel: tpu_custom_call.1
$region0: #{tpu_custom_call.1}
  #allocation0 [shape = 'u32[]', space=smem, size = 0x4, offset = 0x4, fixed_abs, tag = 'smem constant byte address 0x4 - core index']
  #allocation1 [shape = 'u32[72,128]{1,0:T(1,128)}', space=vmem, size = 0x9000, scoped, tag = 'internal scratch']
  %s0 = inlined_call_operand.hbm [shape: f32[16,32], index: 0, kind: input, shape index: {}]
  %s1 = inlined_call_operand.hbm [shape: f32[2,16], index: 1, kind: input, shape index: {}]
  %s2 = inlined_call_operand.hbm [shape: bf16[32,32], index: 2, kind: input, shape index: {}]
  %s3 = inlined_call_operand.hbm [shape: bf16[32,32], index: 3, kind: input, shape index: {}]
  %s4 = inlined_call_operand.hbm [shape: bf16[16,32], index: 4, kind: input, shape index: {}]
  %s5 = inlined_call_operand.hbm [shape: bf16[32,32], index: 5, kind: input, shape index: {}]
  %s6 = inlined_call_operand.vmem [shape: f32[1,32], index: 6, kind: input, shape index: {}]
  %s7 = inlined_call_operand.vmem [shape: f32[1,32], index: 7, kind: input, shape index: {}]
  %s8 = inlined_call_operand.hbm [shape: f32[2,40], index: 8, kind: output, shape index: {}]
  %s9 = sld [smem:[#allocation0]]
  $region66: #{tpu_custom_call.1} parent=0
    _
  %s11 = ssub.s32 1, %s9
  %s12 = scalar_select 0, %s11, %s9
  $region1: #{tpu_custom_call.1} parent=0
    #allocation2 [shape = 'u8[8192]{0}', space=vmem, size = 0x2000, scoped, tag = 'input window, operand 0, single buffered']
    #allocation3 [shape = 's32[1]{0}', space=sflag, size = 0x4, scoped, tag = 'scoped memory for tpu_custom_call.1']
    #allocation4 [shape = 's32[1]{0}', space=sflag, size = 0x4, scoped, tag = 'scoped memory for tpu_custom_call.1']
    #allocation5 [shape = 'u8[1024]{0}', space=vmem, size = 0x400, scoped, tag = 'input window, operand 1, single buffered']
    #allocation6 [shape = 's32[1]{0}', space=sflag, size = 0x4, scoped, tag = 'scoped memory for tpu_custom_call.1']
    #allocation7 [shape = 'u8[8192]{0}', space=vmem, size = 0x2000, scoped, tag = 'input window, operand 2, single buffered']
    #allocation8 [shape = 'u8[8192]{0}', space=vmem, size = 0x2000, scoped, tag = 'input window, operand 3, single buffered']
    #allocation9 [shape = 's32[1]{0}', space=sflag, size = 0x4, scoped, tag = 'scoped memory for tpu_custom_call.1']
    #allocation10 [shape = 'u8[4096]{0}', space=vmem, size = 0x1000, scoped, tag = 'input window, operand 4, single buffered']
    #allocation11 [shape = 'u8[8192]{0}', space=vmem, size = 0x2000, scoped, tag = 'input window, operand 5, single buffered']
    #allocation12 [shape = 's32[1]{0}', space=sflag, size = 0x4, scoped, tag = 'scoped memory for tpu_custom_call.1']
    #allocation13 [shape = 'u8[1024]{0}', space=vmem, size = 0x400, scoped, tag = 'output window, operand 0, single buffered']
    %13 = vsyncpa [#allocation3], 0
    %14 = vsyncpa [#allocation6], 0
    %15 = vsyncpa [#allocation9], 0
    %16 = vsyncpa [#allocation12], 0
    %17 = vsyncpa [#allocation4], 0
    // Predicated region
    $region2: #{tpu_custom_call.1} parent=1 // pred_check
      _
    $region3: #{tpu_custom_call.1} parent=1 // pred_check_branch
      %19 = sbr.rel (0) target = $region5
    $region4: #{tpu_custom_call.1} parent=1 // pred_region
      %21 = vsyncadd [#allocation3], 0
      %s22 = sshll.u32 %s0, 4
      %s23 = int_to_ptr.hbm [resolvable:$true] %s22
      %s24 = sshll.u32 [#allocation2], 4
      %s25 = int_to_ptr.vmem [resolvable:$true] %s24
      %30 = dma.hbm_to_vmem [thread:$0]  %s23, 256, %s25, [#allocation3], 128, 128, 8
    $region5: #{tpu_custom_call.1} parent=1 // pred_fallthru
      _
    // Predicated region
    $region6: #{tpu_custom_call.1} parent=1 // pred_check
      _
    $region7: #{tpu_custom_call.1} parent=1 // pred_check_branch
      %32 = sbr.rel (0) target = $region9
    $region8: #{tpu_custom_call.1} parent=1 // pred_region
      %34 = vsyncadd [#allocation6], 0
      %s36 = sshll.u32 %s1, 4
      %s37 = int_to_ptr.hbm [resolvable:$true] %s36
      %s38 = sshll.u32 [#allocation5], 4
      %s39 = int_to_ptr.vmem [resolvable:$true] %s38
      %41 = dma.hbm_to_vmem [thread:$0]  %s37, 32, %s39, [#allocation6]
    $region9: #{tpu_custom_call.1} parent=1 // pred_fallthru
      _
    // Predicated region
    $region10: #{tpu_custom_call.1} parent=1 // pred_check
      _
    $region11: #{tpu_custom_call.1} parent=1 // pred_check_branch
      %43 = sbr.rel (0) target = $region13
    $region12: #{tpu_custom_call.1} parent=1 // pred_region
      %45 = vsyncadd [#allocation6], 0
      %s46 = sshll.u32 %s2, 4
      %s47 = int_to_ptr.hbm [resolvable:$true] %s46
      %s48 = sshll.u32 [#allocation7], 4
      %s49 = int_to_ptr.vmem [resolvable:$true] %s48
      %54 = dma.hbm_to_vmem [thread:$0]  %s47, 256, %s49, [#allocation6], 64, 64, 4
    $region13: #{tpu_custom_call.1} parent=1 // pred_fallthru
      _
    // Predicated region
    $region14: #{tpu_custom_call.1} parent=1 // pred_check
      _
    $region15: #{tpu_custom_call.1} parent=1 // pred_check_branch
      %56 = sbr.rel (0) target = $region17
    $region16: #{tpu_custom_call.1} parent=1 // pred_region
      %58 = vsyncadd [#allocation9], 0
      %s59 = sshll.u32 %s3, 4
      %s60 = int_to_ptr.hbm [resolvable:$true] %s59
      %s61 = sshll.u32 [#allocation8], 4
      %s62 = int_to_ptr.vmem [resolvable:$true] %s61
      %67 = dma.hbm_to_vmem [thread:$0]  %s60, 256, %s62, [#allocation9], 64, 64, 4
    $region17: #{tpu_custom_call.1} parent=1 // pred_fallthru
      _
    // Predicated region
    $region18: #{tpu_custom_call.1} parent=1 // pred_check
      _
    $region19: #{tpu_custom_call.1} parent=1 // pred_check_branch
      %69 = sbr.rel (0) target = $region21
    $region20: #{tpu_custom_call.1} parent=1 // pred_region
      %71 = vsyncadd [#allocation9], 0
      %s72 = sshll.u32 %s4, 4
      %s73 = int_to_ptr.hbm [resolvable:$true] %s72
      %s74 = sshll.u32 [#allocation10], 4
      %s75 = int_to_ptr.vmem [resolvable:$true] %s74
      %80 = dma.hbm_to_vmem [thread:$0]  %s73, 128, %s75, [#allocation9], 64, 64, 4
    $region21: #{tpu_custom_call.1} parent=1 // pred_fallthru
      _
    // Predicated region
    $region22: #{tpu_custom_call.1} parent=1 // pred_check
      _
    $region23: #{tpu_custom_call.1} parent=1 // pred_check_branch
      %82 = sbr.rel (0) target = $region25
    $region24: #{tpu_custom_call.1} parent=1 // pred_region
      %84 = vsyncadd [#allocation12], 0
      %s85 = sshll.u32 %s5, 4
      %s86 = int_to_ptr.hbm [resolvable:$true] %s85
      %s87 = sshll.u32 [#allocation11], 4
      %s88 = int_to_ptr.vmem [resolvable:$true] %s87
      %93 = dma.hbm_to_vmem [thread:$0]  %s86, 256, %s88, [#allocation12], 64, 64, 4
    $region25: #{tpu_custom_call.1} parent=1 // pred_fallthru
      _
    // Predicated region
    $region26: #{tpu_custom_call.1} parent=1 // pred_check
      _
    $region27: #{tpu_custom_call.1} parent=1 // pred_check_branch
      %95 = sbr.rel (0) target = $region29
    $region28: #{tpu_custom_call.1} parent=1 // pred_region
      _
    $region29: #{tpu_custom_call.1} parent=1 // pred_fallthru
      _
    // Predicated region
    $region30: #{tpu_custom_call.1} parent=1 // pred_check
      _
    $region31: #{tpu_custom_call.1} parent=1 // pred_check_branch
      %97 = sbr.rel (0) target = $region33
    $region32: #{tpu_custom_call.1} parent=1 // pred_region
      _
    $region33: #{tpu_custom_call.1} parent=1 // pred_fallthru
      _
    // Predicated region
    $region34: #{tpu_custom_call.1} parent=1 // pred_check
      _
    $region35: #{tpu_custom_call.1} parent=1 // pred_check_branch
      %99 = sbr.rel (0) target = $region37
    $region36: #{tpu_custom_call.1} parent=1 // pred_region
      %101 = dma.done [#allocation3], 256
    $region37: #{tpu_custom_call.1} parent=1 // pred_fallthru
      _
    // Predicated region
    $region38: #{tpu_custom_call.1} parent=1 // pred_check
      _
    $region39: #{tpu_custom_call.1} parent=1 // pred_check_branch
      %103 = sbr.rel (0) target = $region41
    $region40: #{tpu_custom_call.1} parent=1 // pred_region
      %105 = dma.done [#allocation6], 32
    $region41: #{tpu_custom_call.1} parent=1 // pred_fallthru
      _
    // Predicated region
    $region42: #{tpu_custom_call.1} parent=1 // pred_check
      _
    $region43: #{tpu_custom_call.1} parent=1 // pred_check_branch
      %107 = sbr.rel (0) target = $region45
    $region44: #{tpu_custom_call.1} parent=1 // pred_region
      %109 = dma.done [#allocation6], 256
    $region45: #{tpu_custom_call.1} parent=1 // pred_fallthru
      _
    // Predicated region
    $region46: #{tpu_custom_call.1} parent=1 // pred_check
      _
    $region47: #{tpu_custom_call.1} parent=1 // pred_check_branch
      %111 = sbr.rel (0) target = $region49
    $region48: #{tpu_custom_call.1} parent=1 // pred_region
      %113 = dma.done [#allocation9], 256
    $region49: #{tpu_custom_call.1} parent=1 // pred_fallthru
      _
    // Predicated region
    $region50: #{tpu_custom_call.1} parent=1 // pred_check
      _
    $region51: #{tpu_custom_call.1} parent=1 // pred_check_branch
      %115 = sbr.rel (0) target = $region53
    $region52: #{tpu_custom_call.1} parent=1 // pred_region
      %117 = dma.done [#allocation9], 128
    $region53: #{tpu_custom_call.1} parent=1 // pred_fallthru
      _
    // Predicated region
    $region54: #{tpu_custom_call.1} parent=1 // pred_check
      _
    $region55: #{tpu_custom_call.1} parent=1 // pred_check_branch
      %119 = sbr.rel (0) target = $region57
    $region56: #{tpu_custom_call.1} parent=1 // pred_region
      %121 = dma.done [#allocation12], 256
    $region57: #{tpu_custom_call.1} parent=1 // pred_fallthru
      _
    %v123 = vld [vmem:[#allocation2] sm:$0xff]
    %v124 = vld [vmem:[#allocation2 + $0x8] sm:$0xff]
    %v125 = vpack.c.bf16 %v124, %v123
    %v126 = vld [vmem:[#allocation5] sm:$0x3]
    %v127 = vpack.c.bf16 %v126, %v126
    %v128 = vld [vmem:[#allocation7] sm:$0xf]
    %v129 = vld [vmem:[#allocation7 + $0x4] sm:$0xf]
    %v130 = vld [vmem:[#allocation7 + $0x8] sm:$0xf]
    %v131 = vld [vmem:[#allocation7 + $0xc] sm:$0xf]
    %v136 = vunpack.c.l.b16 %v128
    %v137 = vunpack.c.l.b16 %v129
    %v138 = vunpack.c.l.b16 %v130
    %v139 = vunpack.c.l.b16 %v131
    %v140 = vpack.c.b16 %v137, %v136
    %v141 = vpack.c.b16 %v139, %v138
    %vm144 = vcmask 261120
    %v146 = vsel %vm144, %v125, 0
    %148 = vmatpush.bf16.msra.mxu0 0
    %149 = vmatpush.bf16.msra.mxu0 0
    %150 = vmatpush.bf16.msra.mxu0 0
    %151 = vmatpush.bf16.msra.mxu0 0
    %152 = vmatpush.bf16.msra.mxu0 0
    %153 = vmatpush.bf16.msra.mxu0 0
    %154 = vmatpush.bf16.msra.mxu0 %v141
    %155 = vmatpush.bf16.msra.mxu0 %v140
    %156 = vmatmul.bf16.gmra.mxu0 %v146
    %v157 = vpop.f32.mrf.mxu0
    %v158 = vadd.f32 0.0, %v157
    %v159 = vpop.f32.mrf.mxu0
    %v160 = vadd.f32 0.0, %v159
    %161 = vdwg.mxu0
    %v162 = vld [vmem:[#allocation8] sm:$0xf]
    %v163 = vld [vmem:[#allocation8 + $0x4] sm:$0xf]
    %v164 = vld [vmem:[#allocation8 + $0x8] sm:$0xf]
    %v165 = vld [vmem:[#allocation8 + $0xc] sm:$0xf]
    %v170 = vunpack.c.l.b16 %v162
    %v171 = vunpack.c.l.b16 %v163
    %v172 = vunpack.c.l.b16 %v164
    %v173 = vunpack.c.l.b16 %v165
    %v174 = vpack.c.b16 %v171, %v170
    %v175 = vpack.c.b16 %v173, %v172
    %178 = vmatpush.bf16.msra.mxu0 0
    %179 = vmatpush.bf16.msra.mxu0 0
    %180 = vmatpush.bf16.msra.mxu0 0
    %181 = vmatpush.bf16.msra.mxu0 0
    %182 = vmatpush.bf16.msra.mxu0 0
    %183 = vmatpush.bf16.msra.mxu0 0
    %184 = vmatpush.bf16.msra.mxu0 %v175
    %185 = vmatpush.bf16.msra.mxu0 %v174
    %186 = vmatmul.bf16.gmra.mxu0 %v146
    %v187 = vpop.f32.mrf.mxu0
    %v188 = vadd.f32 0.0, %v187
    %v189 = vpop.f32.mrf.mxu0
    %v190 = vadd.f32 0.0, %v189
    %191 = vdwg.mxu0
    %v192 = vld [vmem:[#allocation10] sm:$0xf]
    %v193 = vld [vmem:[#allocation10 + $0x4] sm:$0xf]
    %v196 = vunpack.c.l.b16 %v192
    %v197 = vunpack.c.l.b16 %v193
    %v198 = vpack.c.b16 %v197, %v196
    %vm200 = vcmask 130048
    %v202 = vsel %vm200, %v127, 0
    %204 = vmatpush.bf16.msra.mxu0 0
    %205 = vmatpush.bf16.msra.mxu0 0
    %206 = vmatpush.bf16.msra.mxu0 0
    %207 = vmatpush.bf16.msra.mxu0 0
    %208 = vmatpush.bf16.msra.mxu0 0
    %209 = vmatpush.bf16.msra.mxu0 0
    %210 = vmatpush.bf16.msra.mxu0 0
    %211 = vmatpush.bf16.msra.mxu0 %v198
    %212 = vmatmul.bf16.gmra.mxu0 %v202
    %v213 = vpop.f32.mrf.mxu0
    %v214 = vadd.f32 0.0, %v213
    %v215 = vpop.f32.mrf.mxu0
    %216 = vdwg.mxu0
    %v218 = vrot.slane %v214, 1
    %v219 = vperm.slane %v214, 0
    %v220 = vperm.slane %v218, 0
    %v223 = vmul.f32 %v158, %v219
    %v224 = vmul.f32 %v160, %v220
    %v225 = vsel %vm144, %v223, 0.0
    %226 = vadd.xlane.f32.xlu0 %v225
    %v227 = vpop.xlane.xlu0 %226
    %v228 = vsel %vm144, %v224, 0.0
    %229 = vadd.xlane.f32.xlu0 %v228
    %v230 = vpop.xlane.xlu0 %229
    %v231 = vmul.f32 %v227, 0.17677669
    %v232 = vmul.f32 %v230, 0.17677669
    %v235 = vlaneseq
    %v236 = vand.u32 %v235, 127
    %v237 = vperm.slane %v231, %v236
    %v238 = vperm.slane %v232, %v236
    %vm239 = vcmask 1041409
    %v240 = vsel %vm239, %v238, %v237
    %vm242 = vcmask 58368
    %v243 = vsel %vm242, %v240, -inf
    %244 = vmax.xlane.f32.xlu0 %v243
    %v245 = vpop.xlane.xlu0 %244
    %v247 = vperm.slane %v245, 0
    %v248 = vperm.slane %v245, 1
    %v251 = vsub.f32 %v231, %v247
    %v252 = vsub.f32 %v232, %v248
    %v253 = vmul.f32 %v251, 1.442695
    %v254 = vpow.pop %v253
    %v255 = vmul.f32 %v252, 1.442695
    %v256 = vpow.pop %v255
    %259 = vset.pattern.permute.xlu0 0
    %260 = vperm.xlu0 %259, %v254
    %v261 = vpop.permute.xlu0 %260
    %262 = vset.pattern.permute.xlu0 0
    %263 = vperm.xlu0 %262, %v256
    %v264 = vpop.permute.xlu0 %263
    %v265 = vperm.slane %v261, %v236
    %v266 = vperm.slane %v264, %v236
    %v267 = vsel %vm239, %v266, %v265
    %v269 = vsel %vm242, %v267, 0.0
    %270 = vadd.xlane.f32.xlu0 %v269
    %v271 = vpop.xlane.xlu0 %270
    %v272 = vrcp.pop %v271
    %v274 = vperm.slane %v272, 0
    %v275 = vperm.slane %v272, 1
    %v278 = vmul.f32 %v254, %v274
    %v279 = vmul.f32 %v256, %v275
    %281 = vset.pattern.permute.xlu0 0
    %282 = vperm.xlu0 %281, %v278
    %v283 = vpop.permute.xlu0 %282
    %286 = vset.pattern.permute.xlu0 0
    %287 = vperm.xlu0 %286, %v279
    %v288 = vpop.permute.xlu0 %287
    %v290 = vmul.f32 %v188, %v283
    %v291 = vmul.f32 %v190, %v288
    %v292 = vsel %vm144, %v290, 0.0
    %v293 = vrot.slane %v292, 4
    %v294 = vadd.f32 %v292, %v293
    %v295 = vrot.slane %v294, 2
    %v296 = vadd.f32 %v294, %v295
    %v297 = vrot.slane %v296, 1
    %v298 = vadd.f32 %v296, %v297
    %v299 = vsel %vm144, %v291, 0.0
    %v300 = vrot.slane %v299, 4
    %v301 = vadd.f32 %v299, %v300
    %v302 = vrot.slane %v301, 2
    %v303 = vadd.f32 %v301, %v302
    %v304 = vrot.slane %v303, 1
    %v305 = vadd.f32 %v303, %v304
    %v306 = vpack.c.bf16 %v298, %v298
    %v307 = vpack.c.bf16 %v305, %v305
    %v308 = vld [vmem:[#allocation11] sm:$0xf]
    %v309 = vld [vmem:[#allocation11 + $0x4] sm:$0xf]
    %v310 = vld [vmem:[#allocation11 + $0x8] sm:$0xf]
    %v311 = vld [vmem:[#allocation11 + $0xc] sm:$0xf]
    %v314 = vunpack.c.l.b16 %v306
    %v315 = vunpack.c.l.b16 %v307
    %v316 = vsel %vm239, %v315, %v314
    %v317 = vpack.c.b16 %v316, %v316
    %v322 = vunpack.c.l.b16 %v308
    %v323 = vunpack.c.l.b16 %v309
    %v324 = vunpack.c.l.b16 %v310
    %v325 = vunpack.c.l.b16 %v311
    %v326 = vpack.c.b16 %v323, %v322
    %v327 = vpack.c.b16 %v325, %v324
    %v331 = vsel %vm144, %v317, 0
    %333 = vmatpush.bf16.msra.mxu0 0
    %334 = vmatpush.bf16.msra.mxu0 0
    %335 = vmatpush.bf16.msra.mxu0 0
    %336 = vmatpush.bf16.msra.mxu0 0
    %337 = vmatpush.bf16.msra.mxu0 0
    %338 = vmatpush.bf16.msra.mxu0 0
    %339 = vmatpush.bf16.msra.mxu0 %v327
    %340 = vmatpush.bf16.msra.mxu0 %v326
    %341 = vmatmul.bf16.gmra.mxu0 %v331
    %v342 = vpop.f32.mrf.mxu0
    %v343 = vadd.f32 0.0, %v342
    %v344 = vpop.f32.mrf.mxu0
    %345 = vdwg.mxu0
    %v346 = vtanh.pop %v343
    %vm347 = vcmask 254976
    %v348 = vsel %vm347, %v346, 0.0
    %349 = vadd.xlane.f32.xlu0 %v348
    %v350 = vpop.xlane.xlu0 %349
    %v351 = vrcp.pop 32.0
    %v352 = vmul.f32 32.0, %v351
    %v353 = vsub.f32 1.0, %v352
    %v354 = vmul.f32 %v351, %v353
    %v355 = vadd.f32 %v351, %v354
    %vm356 = vweird.f32 %v351
    %v357 = vsel %vm356, %v351, %v355
    %v358 = vmul.f32 %v350, %v357
    %v359 = vsub.f32 %v346, %v358
    %v360 = vmul.f32 %v359, %v359
    %v361 = vsel %vm347, %v360, 0.0
    %362 = vadd.xlane.f32.xlu0 %v361
    %v363 = vpop.xlane.xlu0 %362
    %v364 = vmul.f32 %v363, %v357
    %v365 = vadd.f32 %v364, 1e-05
    %v366 = vrsqrt.pop %v365
    %v367 = vmul.f32 %v366, %v365
    %v368 = vmul.f32 %v367, %v366
    %v369 = vmul.f32 0.5, %v368
    %v370 = vsub.f32 1.5, %v369
    %v371 = vmul.f32 %v366, %v370
    %vm372 = vweird.f32 %v365
    %vm373 = vweird.f32 %v366
    %vm374 = vmor %vm372, %vm373
    %v375 = vsel %vm374, %v366, %v371
    %v376 = vmul.f32 %v359, %v375
    %v377 = vld [vmem:[%s6] sm:$0x1]
    %v379 = vperm.slane %v377, 0
    %v381 = vmul.f32 %v376, %v379
    %v382 = vld [vmem:[%s7] sm:$0x1]
    %v384 = vperm.slane %v382, 0
    %v386 = vadd.f32 %v381, %v384
    %v387 = vadd.s32 %v236, 4294967264
    %v388 = vperm.slane %v283, %v387
    %v389 = vperm.slane %v288, %v387
    %v390 = vsel %vm239, %v389, %v388
    %v392 = vsel %vm144, %v386, %v390
    %vm393 = vcmask 320512
    %394 = vst.msk [vmem:[#allocation13] sm:$0x3] %vm393, %v392
    // Predicated region
    $region58: #{tpu_custom_call.1} parent=1 // pred_check
      _
    $region59: #{tpu_custom_call.1} parent=1 // pred_check_branch
      %396 = sbr.rel (0) target = $region61
    $region60: #{tpu_custom_call.1} parent=1 // pred_region
      %398 = vsyncadd [#allocation4], 0
      %s400 = sshll.u32 [#allocation13], 4
      %s401 = int_to_ptr.vmem [resolvable:$true] %s400
      %s402 = sshll.u32 %s8, 4
      %s403 = int_to_ptr.hbm [resolvable:$true] %s402
      %405 = dma.vmem_to_hbm [thread:$0]  %s401, 32, %s403, [#allocation4]
    $region61: #{tpu_custom_call.1} parent=1 // pred_fallthru
      _
    // Predicated region
    $region62: #{tpu_custom_call.1} parent=1 // pred_check
      _
    $region63: #{tpu_custom_call.1} parent=1 // pred_check_branch
      %407 = sbr.rel (0) target = $region65
    $region64: #{tpu_custom_call.1} parent=1 // pred_region
      %409 = dma.done [#allocation4], 32
    $region65: #{tpu_custom_call.1} parent=1 // pred_fallthru
      _
    %410 = vsyncpa [#allocation3], 1
    %411 = vsyncpa [#allocation6], 1
    %412 = vsyncpa [#allocation9], 1
    %413 = vsyncpa [#allocation12], 1
    %414 = vsyncpa [#allocation4], 1

</llo_original>
